<compile_context>
chip_gen: v5e
topology: v5e:2x2
jax: 0.10.0
libtpu: 0.0.40
codegen_flags: <defaults>
</compile_context>

<pallas_src>
import functools

import jax
import jax.numpy as jnp
from jax.experimental import pallas as pl
from jax.experimental.pallas import tpu as pltpu

BN_EPS = 1e-5


def _round_up(x, m):
    return ((x + m - 1) // m) * m


def _vmem_capacity_bytes():
    try:
        cap = getattr(pltpu.get_tpu_info(), "vmem_capacity_bytes", None)
        if cap:
            return int(cap)
    except Exception:
        pass
    return 64 << 20  # conservative default (v7x per-TC VMEM)


def _pick_tile_rows(pk, max_rows):
    """Tile size along the packed-row axis.

    Returns (tile_rows, padded_rows): tile_rows is a multiple of 8 (or the full
    extent for tiny inputs) that divides padded_rows, fits the VMEM row budget,
    and prefers >= 2 grid steps so the "parallel" axis can shard across the two
    TensorCores on v7x."""
    if pk <= 8:
        return pk, pk
    pk_r = _round_up(pk, 8)
    cap = min(max_rows, pk_r)
    cap = max(8, cap - cap % 8)
    t = cap
    while t > 8 and pk_r % t != 0:
        t -= 8
    if t == pk_r and pk_r >= 16:          # single tile -> split for megacore
        t2 = (pk_r // 2) - (pk_r // 2) % 8
        while t2 > 8 and pk_r % t2 != 0:
            t2 -= 8
        if t2 >= 8:
            t = t2
    return t, pk_r


def _stats_kernel(xa_ref, xb_ref, wa_ref, wb_ref, stats_ref):
    # ReLU (elementwise, exact in bf16) + the two 1x1 stride-2 convs as two MXU
    # dots with f32 accumulation, then per-lane partial sums for BatchNorm.
    xa = jnp.maximum(xa_ref[...], 0.0)
    xb = jnp.maximum(xb_ref[...], 0.0)
    ya = jnp.dot(xa, wa_ref[...], preferred_element_type=jnp.float32)
    yb = jnp.dot(xb, wb_ref[...], preferred_element_type=jnp.float32)
    y = jnp.concatenate([ya, yb], axis=-1)          # (tpk, k*C_out) f32
    psum = jnp.sum(y, axis=0, keepdims=True)        # (1, k*C_out)
    psq = jnp.sum(y * y, axis=0, keepdims=True)     # (1, k*C_out)
    stats_ref[...] = jnp.concatenate([psum, psq], axis=0)[None]   # (1, 2, k*C_out)


def _norm_kernel(xa_ref, xb_ref, wa_ref, wb_ref, scale_ref, shift_ref, out_ref):
    # Recompute y for this tile (cheaper than staging y in HBM) and apply the
    # folded BN affine in f32: out = y*scale + shift.  Output tile is lane-dense.
    xa = jnp.maximum(xa_ref[...], 0.0)
    xb = jnp.maximum(xb_ref[...], 0.0)
    ya = jnp.dot(xa, wa_ref[...], preferred_element_type=jnp.float32)
    yb = jnp.dot(xb, wb_ref[...], preferred_element_type=jnp.float32)
    y = jnp.concatenate([ya, yb], axis=-1)
    out_ref[...] = y * scale_ref[...] + shift_ref[...]


def factorized_reduce(x, w1, w2, gamma, beta, *, compute_dtype=jnp.bfloat16):
    """x: (N, C_in, H, W) f32 NCHW (PyTorch convention).
       w1, w2: (C_out//2, C_in) 1x1-conv weights (kernel dims squeezed).
       gamma, beta: (C_out,) BatchNorm affine params.
       Returns (N, C_out, H//2, W//2) f32."""
    N, C_in, H, W = x.shape
    assert H % 2 == 0 and W % 2 == 0, "even H, W required (matches PyTorch concat)"
    C_half = w1.shape[0]
    C_out = 2 * C_half
    Ho, Wo = H // 2, W // 2
    P = N * Ho * Wo

    # ---- row->lane packing factor: keep matmul operands and the output store
    # lane-dense (>=128 lanes) even when C_out < 128 (typical DARTS cells).
    if C_out >= 128:
        k = 1
    else:
        k = -(-128 // C_out)
        if P >= 8:
            k = max(1, min(k, P // 8))   # keep >= 8 packed rows when possible
    kCi, kCh, kCo = k * C_in, k * C_half, k * C_out

    # ---- glue: gather both stride-2 grids once, cast the dominant HBM stream
    # to bf16, channels on the lane axis.
    # TODO(synk): accepting NHWC input / returning NHWC would remove these
    # layout passes entirely; NCHW kept to preserve the PyTorch interface.
    xr = x.astype(compute_dtype)
    xe = jnp.transpose(xr[:, :, 0::2, 0::2], (0, 2, 3, 1)).reshape(P, C_in)  # conv1 taps
    xo = jnp.transpose(xr[:, :, 1::2, 1::2], (0, 2, 3, 1)).reshape(P, C_in)  # conv2 taps

    # ---- generation-aware VMEM budget (v5e/v6e: 128 MiB, v7x: 64 MiB) ----
    bytes_in = jnp.dtype(compute_dtype).itemsize
    vmem_cap = _vmem_capacity_bytes()
    if vmem_cap >= (100 << 20):          # v5e / v6e
        work_budget, limit_cap = 48 << 20, 96 << 20
    else:                                # v7x: leave headroom below physical
        work_budget, limit_cap = 24 << 20, 52 << 20
    per_row = 2 * (2 * kCi * bytes_in) + 2 * (kCo * 4)   # dbl-buffered inputs + f32 out
    budget_rows = max(8, min(8192, work_budget // per_row))

    Pk0 = -(-P // k)
    tpk, Pk_pad = _pick_tile_rows(Pk0, budget_rows)
    num_tiles = Pk_pad // tpk
    P_pad = Pk_pad * k
    if P_pad > P:
        # Padded rows are zero: relu(0) @ W == 0 adds nothing to sum/sum_sq, the
        # true count P is used for mean/var, and padded output rows are sliced off.
        xe = jnp.pad(xe, ((0, P_pad - P), (0, 0)))
        xo = jnp.pad(xo, ((0, P_pad - P), (0, 0)))
    xa = xe.reshape(Pk_pad, kCi)   # k consecutive pixels folded into the lane axis
    xb = xo.reshape(Pk_pad, kCi)

    # ---- weights: dense w^T when k == 1 (no zero-padded block-diag at large
    # C_in), k-block-diagonal replicas when rows are folded into lanes.
    w1t = jnp.transpose(w1).astype(jnp.float32)    # (C_in, C_half)
    w2t = jnp.transpose(w2).astype(jnp.float32)
    if k > 1:
        eye = jnp.eye(k, dtype=jnp.float32)
        w1t = jnp.einsum('ij,cd->icjd', eye, w1t).reshape(kCi, kCh)
        w2t = jnp.einsum('ij,cd->icjd', eye, w2t).reshape(kCi, kCh)
    wa = w1t.astype(compute_dtype)
    wb = w2t.astype(compute_dtype)

    weight_bytes = 2 * kCi * kCh * bytes_in
    step_bytes = tpk * per_row + 2 * weight_bytes + 4 * kCo * 4 + (2 << 20)
    vmem_limit = int(min(limit_cap, max(16 << 20, 2 * step_bytes)))
    cparams = pltpu.CompilerParams(
        dimension_semantics=("parallel",), vmem_limit_bytes=vmem_limit)

    # ---- pass 1: per-tile partial BN statistics (sum, sum of squares) ----
    stats = pl.pallas_call(
        _stats_kernel,
        out_shape=jax.ShapeDtypeStruct((num_tiles, 2, kCo), jnp.float32),
        grid=(num_tiles,),
        in_specs=[
            pl.BlockSpec((tpk, kCi), lambda t: (t, 0)),
            pl.BlockSpec((tpk, kCi), lambda t: (t, 0)),
            pl.BlockSpec((kCi, kCh), lambda t: (0, 0)),
            pl.BlockSpec((kCi, kCh), lambda t: (0, 0)),
        ],
        out_specs=pl.BlockSpec((1, 2, kCo), lambda t: (t, 0, 0)),
        compiler_params=cparams,
    )(xa, xb, wa, wb)

    # ---- fold BN into one per-channel affine (tiny, plain JAX, all f32) ----
    # TODO(synk): E[y^2]-E[y]^2 in f32 can lose precision for very large P;
    # switch to Welford-style tile combination if BN-stat precision matters.
    tot = jnp.sum(stats, axis=0).reshape(2, 2, k, C_half).sum(axis=2).reshape(2, C_out)
    mean = tot[0] / P
    var = jnp.maximum(tot[1] / P - mean * mean, 0.0)     # biased var (training-mode BN)
    scale = gamma.astype(jnp.float32) * jax.lax.rsqrt(var + BN_EPS)
    shift = beta.astype(jnp.float32) - mean * scale
    scale_p = jnp.broadcast_to(scale.reshape(2, 1, C_half), (2, k, C_half)).reshape(1, kCo)
    shift_p = jnp.broadcast_to(shift.reshape(2, 1, C_half), (2, k, C_half)).reshape(1, kCo)

    # ---- pass 2: recompute y per tile, apply folded affine, lane-dense store ----
    out_packed = pl.pallas_call(
        _norm_kernel,
        out_shape=jax.ShapeDtypeStruct((Pk_pad, kCo), jnp.float32),
        grid=(num_tiles,),
        in_specs=[
            pl.BlockSpec((tpk, kCi), lambda t: (t, 0)),
            pl.BlockSpec((tpk, kCi), lambda t: (t, 0)),
            pl.BlockSpec((kCi, kCh), lambda t: (0, 0)),
            pl.BlockSpec((kCi, kCh), lambda t: (0, 0)),
            pl.BlockSpec((1, kCo), lambda t: (0, 0)),
            pl.BlockSpec((1, kCo), lambda t: (0, 0)),
        ],
        out_specs=pl.BlockSpec((tpk, kCo), lambda t: (t, 0)),
        compiler_params=cparams,
    )(xa, xb, wa, wb, scale_p, shift_p)

    # ---- glue: unpack lanes -> rows and return NCHW (fuses with final transpose) ----
    out = out_packed.reshape(Pk_pad, 2, k, C_half)
    out = jnp.transpose(out, (0, 2, 1, 3)).reshape(P_pad, C_out)[:P]
    out = out.reshape(N, Ho, Wo, C_out)
    return jnp.transpose(out, (0, 3, 1, 2))


def _reference(x, w1, w2, gamma, beta):
    xr = jnp.maximum(x, 0.0)
    y1 = jnp.einsum('nchw,oc->nohw', xr[:, :, 0::2, 0::2], w1)
    y2 = jnp.einsum('nchw,oc->nohw', xr[:, :, 1::2, 1::2], w2)
    y = jnp.concatenate([y1, y2], axis=1)
    mean = y.mean(axis=(0, 2, 3), keepdims=True)
    var = ((y - mean) ** 2).mean(axis=(0, 2, 3), keepdims=True)
    yn = (y - mean) / jnp.sqrt(var + BN_EPS)
    return yn * gamma.reshape(1, -1, 1, 1) + beta.reshape(1, -1, 1, 1)


if __name__ == "__main__":
    # Small shapes: N=2, C_in=4, C_out=8, H=W=16  -> output (2, 8, 8, 8)
    N, C_in, C_out, H, W = 2, 4, 8, 16, 16
    C_half = C_out // 2

    key = jax.random.PRNGKey(0)
    kx, k1, k2 = jax.random.split(key, 3)
    x = jax.random.normal(kx, (N, C_in, H, W), dtype=jnp.float32)
    # Conv2d(C_in, C_out//2, 1, stride=2, bias=False) weights, kernel dims squeezed.
    w1 = jax.random.normal(k1, (C_half, C_in), dtype=jnp.float32) * 0.1
    w2 = jax.random.normal(k2, (C_half, C_in), dtype=jnp.float32) * 0.1
    # BatchNorm2d default affine init: weight=1, bias=0.
    gamma = jnp.ones((C_out,), dtype=jnp.float32)
    beta = jnp.zeros((C_out,), dtype=jnp.float32)

    ref = _reference(x, w1, w2, gamma, beta)

    # f32 compute path: tight check against the f32 reference.
    fr_f32 = jax.jit(functools.partial(factorized_reduce, compute_dtype=jnp.float32))
    out32 = fr_f32(x, w1, w2, gamma, beta)
    jax.block_until_ready(out32)
    assert out32.shape == (N, C_out, H // 2, W // 2)
    assert jnp.allclose(out32, ref, atol=1e-4, rtol=1e-4)

    # Default bf16 path (halves the dominant HBM stream): looser tolerance.
    fr_bf16 = jax.jit(factorized_reduce)
    out16 = fr_bf16(x, w1, w2, gamma, beta)
    jax.block_until_ready(out16)
    assert out16.shape == (N, C_out, H // 2, W // 2)
    assert jnp.allclose(out16, ref, atol=8e-2, rtol=8e-2)

    print("KERNEL_OK")
</pallas_src>

<mosaic_0001>
module attributes {stable_mosaic.version = 11 : i64} {
  func.func @_stats_kernel(%arg0: i32, %arg1: memref<8x64xf32, #tpu.memory_space<vmem>>, %arg2: memref<8x64xf32, #tpu.memory_space<vmem>>, %arg3: memref<64x64xf32, #tpu.memory_space<vmem>>, %arg4: memref<64x64xf32, #tpu.memory_space<vmem>>, %arg5: memref<1x2x128xf32, #tpu.memory_space<vmem>>) attributes {dimension_semantics = [#tpu.dimension_semantics<parallel>], iteration_bounds = array<i64: 1>, scalar_prefetch = 0 : i64, scratch_operands = 0 : i64, tpu.core_type = #tpu.core_type<tc>, window_params = [{transform_indices = @transform_0, window_bounds = array<i64: 8, 64>}, {transform_indices = @transform_1, window_bounds = array<i64: 8, 64>}, {pipeline_mode = #tpu.pipeline_mode<synchronous>, transform_indices = @transform_2, window_bounds = array<i64: 64, 64>}, {pipeline_mode = #tpu.pipeline_mode<synchronous>, transform_indices = @transform_3, window_bounds = array<i64: 64, 64>}, {transform_indices = @transform_4, window_bounds = array<i64: 1, 2, 128>}]} {
    %c0 = arith.constant 0 : index
    %c0_0 = arith.constant 0 : index
    %0 = vector.load %arg1[%c0, %c0_0] : memref<8x64xf32, #tpu.memory_space<vmem>>, vector<8x64xf32>
    %cst = arith.constant 0.000000e+00 : f32
    %1 = vector.broadcast %cst : f32 to vector<8x64xf32>
    %2 = arith.maximumf %0, %1 : vector<8x64xf32>
    %c0_1 = arith.constant 0 : index
    %c0_2 = arith.constant 0 : index
    %3 = vector.load %arg2[%c0_1, %c0_2] : memref<8x64xf32, #tpu.memory_space<vmem>>, vector<8x64xf32>
    %cst_3 = arith.constant 0.000000e+00 : f32
    %4 = vector.broadcast %cst_3 : f32 to vector<8x64xf32>
    %5 = arith.maximumf %3, %4 : vector<8x64xf32>
    %c0_4 = arith.constant 0 : index
    %c0_5 = arith.constant 0 : index
    %6 = vector.load %arg3[%c0_4, %c0_5] : memref<64x64xf32, #tpu.memory_space<vmem>>, vector<64x64xf32>
    %cst_6 = arith.constant dense<0.000000e+00> : vector<8x64xf32>
    %7 = tpu.matmul %2, %6, %cst_6 {dimension_numbers = #tpu.dot_dimension_numbers<[1], [0], [0], [1], [0, 0, 1, 1], [], []>} : vector<8x64xf32>, vector<64x64xf32>, vector<8x64xf32> -> vector<8x64xf32>
    %c0_7 = arith.constant 0 : index
    %c0_8 = arith.constant 0 : index
    %8 = vector.load %arg4[%c0_7, %c0_8] : memref<64x64xf32, #tpu.memory_space<vmem>>, vector<64x64xf32>
    %cst_9 = arith.constant dense<0.000000e+00> : vector<8x64xf32>
    %9 = tpu.matmul %5, %8, %cst_9 {dimension_numbers = #tpu.dot_dimension_numbers<[1], [0], [0], [1], [0, 0, 1, 1], [], []>} : vector<8x64xf32>, vector<64x64xf32>, vector<8x64xf32> -> vector<8x64xf32>
    %10 = tpu.concatenate %7, %9 in 1 : vector<8x64xf32>, vector<8x64xf32> -> vector<8x128xf32>
    %cst_10 = arith.constant dense<0.000000e+00> : vector<128xf32>
    %11 = vector.multi_reduction <add>, %10, %cst_10 [0] : vector<8x128xf32> to vector<128xf32>
    %12 = vector.shape_cast %11 : vector<128xf32> to vector<1x128xf32>
    %13 = arith.mulf %10, %10 : vector<8x128xf32>
    %cst_11 = arith.constant dense<0.000000e+00> : vector<128xf32>
    %14 = vector.multi_reduction <add>, %13, %cst_11 [0] : vector<8x128xf32> to vector<128xf32>
    %15 = vector.shape_cast %14 : vector<128xf32> to vector<1x128xf32>
    %16 = tpu.concatenate %12, %15 in 0 : vector<1x128xf32>, vector<1x128xf32> -> vector<2x128xf32>
    %17 = vector.shape_cast %16 : vector<2x128xf32> to vector<1x2x128xf32>
    %c0_12 = arith.constant 0 : index
    %c0_13 = arith.constant 0 : index
    %c0_14 = arith.constant 0 : index
    %18 = vector.load %arg5[%c0_12, %c0_13, %c0_14] : memref<1x2x128xf32, #tpu.memory_space<vmem>>, vector<1x2x128xf32>
    tpu.vector_store %arg5[%c0_12, %c0_13, %c0_14], %17 {strides = array<i32>} : memref<1x2x128xf32, #tpu.memory_space<vmem>>, vector<1x2x128xf32>,
    return
  }
  func.func @transform_0(%arg0: i32) -> (i32, i32) {
    %c0_i32 = arith.constant 0 : i32
    %c0_i32_0 = arith.constant 0 : i32
    return %arg0, %c0_i32 : i32, i32
  }
  func.func @transform_1(%arg0: i32) -> (i32, i32) {
    %c0_i32 = arith.constant 0 : i32
    %c0_i32_0 = arith.constant 0 : i32
    return %arg0, %c0_i32 : i32, i32
  }
  func.func @transform_2(%arg0: i32) -> (i32, i32) {
    %c0_i32 = arith.constant 0 : i32
    %c0_i32_0 = arith.constant 0 : i32
    %c0_i32_1 = arith.constant 0 : i32
    return %c0_i32, %c0_i32_0 : i32, i32
  }
  func.func @transform_3(%arg0: i32) -> (i32, i32) {
    %c0_i32 = arith.constant 0 : i32
    %c0_i32_0 = arith.constant 0 : i32
    %c0_i32_1 = arith.constant 0 : i32
    return %c0_i32, %c0_i32_0 : i32, i32
  }
  func.func @transform_4(%arg0: i32) -> (i32, i32, i32) {
    %c0_i32 = arith.constant 0 : i32
    %c0_i32_0 = arith.constant 0 : i32
    %c0_i32_1 = arith.constant 0 : i32
    return %arg0, %c0_i32, %c0_i32_0 : i32, i32, i32
  }
}

module attributes {stable_mosaic.version = 11 : i64} {
  func.func @_norm_kernel(%arg0: i32, %arg1: memref<8x64xf32, #tpu.memory_space<vmem>>, %arg2: memref<8x64xf32, #tpu.memory_space<vmem>>, %arg3: memref<64x64xf32, #tpu.memory_space<vmem>>, %arg4: memref<64x64xf32, #tpu.memory_space<vmem>>, %arg5: memref<1x128xf32, #tpu.memory_space<vmem>>, %arg6: memref<1x128xf32, #tpu.memory_space<vmem>>, %arg7: memref<8x128xf32, #tpu.memory_space<vmem>>) attributes {dimension_semantics = [#tpu.dimension_semantics<parallel>], iteration_bounds = array<i64: 1>, scalar_prefetch = 0 : i64, scratch_operands = 0 : i64, tpu.core_type = #tpu.core_type<tc>, window_params = [{transform_indices = @transform_0, window_bounds = array<i64: 8, 64>}, {transform_indices = @transform_1, window_bounds = array<i64: 8, 64>}, {pipeline_mode = #tpu.pipeline_mode<synchronous>, transform_indices = @transform_2, window_bounds = array<i64: 64, 64>}, {pipeline_mode = #tpu.pipeline_mode<synchronous>, transform_indices = @transform_3, window_bounds = array<i64: 64, 64>}, {pipeline_mode = #tpu.pipeline_mode<synchronous>, transform_indices = @transform_4, window_bounds = array<i64: 1, 128>}, {pipeline_mode = #tpu.pipeline_mode<synchronous>, transform_indices = @transform_5, window_bounds = array<i64: 1, 128>}, {transform_indices = @transform_6, window_bounds = array<i64: 8, 128>}]} {
    %c0 = arith.constant 0 : index
    %c0_0 = arith.constant 0 : index
    %0 = vector.load %arg1[%c0, %c0_0] : memref<8x64xf32, #tpu.memory_space<vmem>>, vector<8x64xf32>
    %cst = arith.constant 0.000000e+00 : f32
    %1 = vector.broadcast %cst : f32 to vector<8x64xf32>
    %2 = arith.maximumf %0, %1 : vector<8x64xf32>
    %c0_1 = arith.constant 0 : index
    %c0_2 = arith.constant 0 : index
    %3 = vector.load %arg2[%c0_1, %c0_2] : memref<8x64xf32, #tpu.memory_space<vmem>>, vector<8x64xf32>
    %cst_3 = arith.constant 0.000000e+00 : f32
    %4 = vector.broadcast %cst_3 : f32 to vector<8x64xf32>
    %5 = arith.maximumf %3, %4 : vector<8x64xf32>
    %c0_4 = arith.constant 0 : index
    %c0_5 = arith.constant 0 : index
    %6 = vector.load %arg3[%c0_4, %c0_5] : memref<64x64xf32, #tpu.memory_space<vmem>>, vector<64x64xf32>
    %cst_6 = arith.constant dense<0.000000e+00> : vector<8x64xf32>
    %7 = tpu.matmul %2, %6, %cst_6 {dimension_numbers = #tpu.dot_dimension_numbers<[1], [0], [0], [1], [0, 0, 1, 1], [], []>} : vector<8x64xf32>, vector<64x64xf32>, vector<8x64xf32> -> vector<8x64xf32>
    %c0_7 = arith.constant 0 : index
    %c0_8 = arith.constant 0 : index
    %8 = vector.load %arg4[%c0_7, %c0_8] : memref<64x64xf32, #tpu.memory_space<vmem>>, vector<64x64xf32>
    %cst_9 = arith.constant dense<0.000000e+00> : vector<8x64xf32>
    %9 = tpu.matmul %5, %8, %cst_9 {dimension_numbers = #tpu.dot_dimension_numbers<[1], [0], [0], [1], [0, 0, 1, 1], [], []>} : vector<8x64xf32>, vector<64x64xf32>, vector<8x64xf32> -> vector<8x64xf32>
    %10 = tpu.concatenate %7, %9 in 1 : vector<8x64xf32>, vector<8x64xf32> -> vector<8x128xf32>
    %c0_10 = arith.constant 0 : index
    %c0_11 = arith.constant 0 : index
    %11 = vector.load %arg5[%c0_10, %c0_11] : memref<1x128xf32, #tpu.memory_space<vmem>>, vector<1x128xf32>
    %12 = vector.broadcast %11 : vector<1x128xf32> to vector<8x128xf32>
    %13 = arith.mulf %10, %12 : vector<8x128xf32>
    %c0_12 = arith.constant 0 : index
    %c0_13 = arith.constant 0 : index
    %14 = vector.load %arg6[%c0_12, %c0_13] : memref<1x128xf32, #tpu.memory_space<vmem>>, vector<1x128xf32>
    %15 = vector.broadcast %14 : vector<1x128xf32> to vector<8x128xf32>
    %16 = arith.addf %13, %15 : vector<8x128xf32>
    %c0_14 = arith.constant 0 : index
    %c0_15 = arith.constant 0 : index
    %17 = vector.load %arg7[%c0_14, %c0_15] : memref<8x128xf32, #tpu.memory_space<vmem>>, vector<8x128xf32>
    tpu.vector_store %arg7[%c0_14, %c0_15], %16 {strides = array<i32>} : memref<8x128xf32, #tpu.memory_space<vmem>>, vector<8x128xf32>,
    return
  }
  func.func @transform_0(%arg0: i32) -> (i32, i32) {
    %c0_i32 = arith.constant 0 : i32
    %c0_i32_0 = arith.constant 0 : i32
    return %arg0, %c0_i32 : i32, i32
  }
  func.func @transform_1(%arg0: i32) -> (i32, i32) {
    %c0_i32 = arith.constant 0 : i32
    %c0_i32_0 = arith.constant 0 : i32
    return %arg0, %c0_i32 : i32, i32
  }
  func.func @transform_2(%arg0: i32) -> (i32, i32) {
    %c0_i32 = arith.constant 0 : i32
    %c0_i32_0 = arith.constant 0 : i32
    %c0_i32_1 = arith.constant 0 : i32
    return %c0_i32, %c0_i32_0 : i32, i32
  }
  func.func @transform_3(%arg0: i32) -> (i32, i32) {
    %c0_i32 = arith.constant 0 : i32
    %c0_i32_0 = arith.constant 0 : i32
    %c0_i32_1 = arith.constant 0 : i32
    return %c0_i32, %c0_i32_0 : i32, i32
  }
  func.func @transform_4(%arg0: i32) -> (i32, i32) {
    %c0_i32 = arith.constant 0 : i32
    %c0_i32_0 = arith.constant 0 : i32
    %c0_i32_1 = arith.constant 0 : i32
    return %c0_i32, %c0_i32_0 : i32, i32
  }
  func.func @transform_5(%arg0: i32) -> (i32, i32) {
    %c0_i32 = arith.constant 0 : i32
    %c0_i32_0 = arith.constant 0 : i32
    %c0_i32_1 = arith.constant 0 : i32
    return %c0_i32, %c0_i32_0 : i32, i32
  }
  func.func @transform_6(%arg0: i32) -> (i32, i32) {
    %c0_i32 = arith.constant 0 : i32
    %c0_i32_0 = arith.constant 0 : i32
    return %arg0, %c0_i32 : i32, i32
  }
}

</mosaic_0001>

<llo_original>
// kernel: factorized_reduce.2
$region0: #{factorized_reduce.2}
  #allocation0 [shape = 'u32[]', space=smem, size = 0x4, offset = 0x4, fixed_abs, tag = 'smem constant byte address 0x4 - core index']
  #allocation1 [shape = 'u32[72,128]{1,0:T(1,128)}', space=vmem, size = 0x9000, scoped, tag = 'internal scratch']
  %s0 = inlined_call_operand.vmem [shape: f32[8,64], index: 0, kind: input, shape index: {}]
  %s1 = inlined_call_operand.vmem [shape: f32[8,64], index: 1, kind: input, shape index: {}]
  %s2 = inlined_call_operand.vmem [shape: f32[64,64], index: 2, kind: input, shape index: {}]
  %s3 = inlined_call_operand.vmem [shape: f32[64,64], index: 3, kind: input, shape index: {}]
  %s4 = inlined_call_operand.vmem [shape: f32[1,2,128], index: 4, kind: output, shape index: {}]
  %s5 = sld [smem:[#allocation0]]
  $region26: #{factorized_reduce.2} parent=0
    _
  %s7 = ssub.s32 1, %s5
  %s8 = scalar_select 0, %s7, %s5
  // Predicated region
  $region2: #{factorized_reduce.2} parent=0 // pred_check
    _
  $region3: #{factorized_reduce.2} parent=0 // pred_check_branch
    %10 = sbr.rel (0) target = $region5
  $region4: #{factorized_reduce.2} parent=0 // pred_region
    _
  $region5: #{factorized_reduce.2} parent=0 // pred_fallthru
    _
  // Predicated region
  $region6: #{factorized_reduce.2} parent=0 // pred_check
    _
  $region7: #{factorized_reduce.2} parent=0 // pred_check_branch
    %12 = sbr.rel (0) target = $region9
  $region8: #{factorized_reduce.2} parent=0 // pred_region
    _
  $region9: #{factorized_reduce.2} parent=0 // pred_fallthru
    _
  // Predicated region
  $region10: #{factorized_reduce.2} parent=0 // pred_check
    _
  $region11: #{factorized_reduce.2} parent=0 // pred_check_branch
    %14 = sbr.rel (0) target = $region13
  $region12: #{factorized_reduce.2} parent=0 // pred_region
    _
  $region13: #{factorized_reduce.2} parent=0 // pred_fallthru
    _
  // Predicated region
  $region14: #{factorized_reduce.2} parent=0 // pred_check
    _
  $region15: #{factorized_reduce.2} parent=0 // pred_check_branch
    %16 = sbr.rel (0) target = $region17
  $region16: #{factorized_reduce.2} parent=0 // pred_region
    _
  $region17: #{factorized_reduce.2} parent=0 // pred_fallthru
    _
  %v17 = vld [vmem:[%s0] sm:$0xff]
  %v18 = vmax.f32 %v17, 0.0
  %v19 = vld [vmem:[%s1] sm:$0xff]
  %v20 = vmax.f32 %v19, 0.0
  %v21 = vld [vmem:[%s2] sm:$0xff]
  %v22 = vld [vmem:[%s2 + $0x8] sm:$0xff]
  %v23 = vld [vmem:[%s2 + $0x10] sm:$0xff]
  %v24 = vld [vmem:[%s2 + $0x18] sm:$0xff]
  %v25 = vld [vmem:[%s2 + $0x20] sm:$0xff]
  %v26 = vld [vmem:[%s2 + $0x28] sm:$0xff]
  %v27 = vld [vmem:[%s2 + $0x30] sm:$0xff]
  %v28 = vld [vmem:[%s2 + $0x38] sm:$0xff]
  %vm29 = vcmask 523264
  %v31 = vsel %vm29, %v18, 0
  %33 = vmatpush.msra.mxu0 0.0
  %34 = vmatpush.msra.mxu0 0.0
  %35 = vmatpush.msra.mxu0 0.0
  %36 = vmatpush.msra.mxu0 0.0
  %37 = vmatpush.msra.mxu0 0.0
  %38 = vmatpush.msra.mxu0 0.0
  %39 = vmatpush.msra.mxu0 0.0
  %40 = vmatpush.msra.mxu0 0.0
  %41 = vmatpush.msra.mxu0 %v28
  %42 = vmatpush.msra.mxu0 %v27
  %43 = vmatpush.msra.mxu0 %v26
  %44 = vmatpush.msra.mxu0 %v25
  %45 = vmatpush.msra.mxu0 %v24
  %46 = vmatpush.msra.mxu0 %v23
  %47 = vmatpush.msra.mxu0 %v22
  %48 = vmatpush.msra.mxu0 %v21
  %49 = vmatmul.f32.gmra.mxu0 %v31
  %v50 = vpop.f32.mrf.mxu0
  %v51 = vadd.f32 0.0, %v50
  %52 = vdwg.mxu0
  %v53 = vld [vmem:[%s3] sm:$0xff]
  %v54 = vld [vmem:[%s3 + $0x8] sm:$0xff]
  %v55 = vld [vmem:[%s3 + $0x10] sm:$0xff]
  %v56 = vld [vmem:[%s3 + $0x18] sm:$0xff]
  %v57 = vld [vmem:[%s3 + $0x20] sm:$0xff]
  %v58 = vld [vmem:[%s3 + $0x28] sm:$0xff]
  %v59 = vld [vmem:[%s3 + $0x30] sm:$0xff]
  %v60 = vld [vmem:[%s3 + $0x38] sm:$0xff]
  %v62 = vsel %vm29, %v20, 0
  %64 = vmatpush.msra.mxu0 0.0
  %65 = vmatpush.msra.mxu0 0.0
  %66 = vmatpush.msra.mxu0 0.0
  %67 = vmatpush.msra.mxu0 0.0
  %68 = vmatpush.msra.mxu0 0.0
  %69 = vmatpush.msra.mxu0 0.0
  %70 = vmatpush.msra.mxu0 0.0
  %71 = vmatpush.msra.mxu0 0.0
  %72 = vmatpush.msra.mxu0 %v60
  %73 = vmatpush.msra.mxu0 %v59
  %74 = vmatpush.msra.mxu0 %v58
  %75 = vmatpush.msra.mxu0 %v57
  %76 = vmatpush.msra.mxu0 %v56
  %77 = vmatpush.msra.mxu0 %v55
  %78 = vmatpush.msra.mxu0 %v54
  %79 = vmatpush.msra.mxu0 %v53
  %80 = vmatmul.f32.gmra.mxu0 %v62
  %v81 = vpop.f32.mrf.mxu0
  %v82 = vadd.f32 0.0, %v81
  %83 = vdwg.mxu0
  %85 = vrot.lane.b32.xlu0 %v82, 64
  %v86 = vpop.permute.xlu0 %85
  %v88 = vsel %vm29, %v51, %v86
  %v89 = vrot.slane %v88, 4
  %v90 = vadd.f32 %v88, %v89
  %v91 = vrot.slane %v90, 2
  %v92 = vadd.f32 %v90, %v91
  %v93 = vrot.slane %v92, 1
  %v94 = vadd.f32 %v92, %v93
  %v95 = vmul.f32 %v88, %v88
  %v96 = vrot.slane %v95, 4
  %v97 = vadd.f32 %v95, %v96
  %v98 = vrot.slane %v97, 2
  %v99 = vadd.f32 %v97, %v98
  %v100 = vrot.slane %v99, 1
  %v101 = vadd.f32 %v99, %v100
  %vm102 = vcmask 1040384
  %v103 = vsel %vm102, %v94, %v101
  %104 = vst [vmem:[%s4] sm:$0x3] %v103
  // Predicated region
  $region18: #{factorized_reduce.2} parent=0 // pred_check
    _
  $region19: #{factorized_reduce.2} parent=0 // pred_check_branch
    %106 = sbr.rel (0) target = $region21
  $region20: #{factorized_reduce.2} parent=0 // pred_region
    _
  $region21: #{factorized_reduce.2} parent=0 // pred_fallthru
    _
  // Predicated region
  $region22: #{factorized_reduce.2} parent=0 // pred_check
    _
  $region23: #{factorized_reduce.2} parent=0 // pred_check_branch
    %108 = sbr.rel (0) target = $region25
  $region24: #{factorized_reduce.2} parent=0 // pred_region
    _
  $region25: #{factorized_reduce.2} parent=0 // pred_fallthru
    _

// kernel: factorized_reduce.3
$region0: #{factorized_reduce.3}
  #allocation0 [shape = 'u32[]', space=smem, size = 0x4, offset = 0x4, fixed_abs, tag = 'smem constant byte address 0x4 - core index']
  #allocation1 [shape = 'u32[72,128]{1,0:T(1,128)}', space=vmem, size = 0x9000, scoped, tag = 'internal scratch']
  %s0 = inlined_call_operand.vmem [shape: f32[8,64], index: 0, kind: input, shape index: {}]
  %s1 = inlined_call_operand.vmem [shape: f32[8,64], index: 1, kind: input, shape index: {}]
  %s2 = inlined_call_operand.vmem [shape: f32[64,64], index: 2, kind: input, shape index: {}]
  %s3 = inlined_call_operand.vmem [shape: f32[64,64], index: 3, kind: input, shape index: {}]
  %s4 = inlined_call_operand.vmem [shape: f32[1,128], index: 4, kind: input, shape index: {}]
  %s5 = inlined_call_operand.vmem [shape: f32[1,128], index: 5, kind: input, shape index: {}]
  %s6 = inlined_call_operand.vmem [shape: f32[8,128], index: 6, kind: output, shape index: {}]
  %s7 = sld [smem:[#allocation0]]
  $region34: #{factorized_reduce.3} parent=0
    _
  %s9 = ssub.s32 1, %s7
  %s10 = scalar_select 0, %s9, %s7
  // Predicated region
  $region2: #{factorized_reduce.3} parent=0 // pred_check
    _
  $region3: #{factorized_reduce.3} parent=0 // pred_check_branch
    %12 = sbr.rel (0) target = $region5
  $region4: #{factorized_reduce.3} parent=0 // pred_region
    _
  $region5: #{factorized_reduce.3} parent=0 // pred_fallthru
    _
  // Predicated region
  $region6: #{factorized_reduce.3} parent=0 // pred_check
    _
  $region7: #{factorized_reduce.3} parent=0 // pred_check_branch
    %14 = sbr.rel (0) target = $region9
  $region8: #{factorized_reduce.3} parent=0 // pred_region
    _
  $region9: #{factorized_reduce.3} parent=0 // pred_fallthru
    _
  // Predicated region
  $region10: #{factorized_reduce.3} parent=0 // pred_check
    _
  $region11: #{factorized_reduce.3} parent=0 // pred_check_branch
    %16 = sbr.rel (0) target = $region13
  $region12: #{factorized_reduce.3} parent=0 // pred_region
    _
  $region13: #{factorized_reduce.3} parent=0 // pred_fallthru
    _
  // Predicated region
  $region14: #{factorized_reduce.3} parent=0 // pred_check
    _
  $region15: #{factorized_reduce.3} parent=0 // pred_check_branch
    %18 = sbr.rel (0) target = $region17
  $region16: #{factorized_reduce.3} parent=0 // pred_region
    _
  $region17: #{factorized_reduce.3} parent=0 // pred_fallthru
    _
  // Predicated region
  $region18: #{factorized_reduce.3} parent=0 // pred_check
    _
  $region19: #{factorized_reduce.3} parent=0 // pred_check_branch
    %20 = sbr.rel (0) target = $region21
  $region20: #{factorized_reduce.3} parent=0 // pred_region
    _
  $region21: #{factorized_reduce.3} parent=0 // pred_fallthru
    _
  // Predicated region
  $region22: #{factorized_reduce.3} parent=0 // pred_check
    _
  $region23: #{factorized_reduce.3} parent=0 // pred_check_branch
    %22 = sbr.rel (0) target = $region25
  $region24: #{factorized_reduce.3} parent=0 // pred_region
    _
  $region25: #{factorized_reduce.3} parent=0 // pred_fallthru
    _
  %v23 = vld [vmem:[%s0] sm:$0xff]
  %v24 = vmax.f32 %v23, 0.0
  %v25 = vld [vmem:[%s1] sm:$0xff]
  %v26 = vmax.f32 %v25, 0.0
  %v27 = vld [vmem:[%s2] sm:$0xff]
  %v28 = vld [vmem:[%s2 + $0x8] sm:$0xff]
  %v29 = vld [vmem:[%s2 + $0x10] sm:$0xff]
  %v30 = vld [vmem:[%s2 + $0x18] sm:$0xff]
  %v31 = vld [vmem:[%s2 + $0x20] sm:$0xff]
  %v32 = vld [vmem:[%s2 + $0x28] sm:$0xff]
  %v33 = vld [vmem:[%s2 + $0x30] sm:$0xff]
  %v34 = vld [vmem:[%s2 + $0x38] sm:$0xff]
  %vm35 = vcmask 523264
  %v37 = vsel %vm35, %v24, 0
  %39 = vmatpush.msra.mxu0 0.0
  %40 = vmatpush.msra.mxu0 0.0
  %41 = vmatpush.msra.mxu0 0.0
  %42 = vmatpush.msra.mxu0 0.0
  %43 = vmatpush.msra.mxu0 0.0
  %44 = vmatpush.msra.mxu0 0.0
  %45 = vmatpush.msra.mxu0 0.0
  %46 = vmatpush.msra.mxu0 0.0
  %47 = vmatpush.msra.mxu0 %v34
  %48 = vmatpush.msra.mxu0 %v33
  %49 = vmatpush.msra.mxu0 %v32
  %50 = vmatpush.msra.mxu0 %v31
  %51 = vmatpush.msra.mxu0 %v30
  %52 = vmatpush.msra.mxu0 %v29
  %53 = vmatpush.msra.mxu0 %v28
  %54 = vmatpush.msra.mxu0 %v27
  %55 = vmatmul.f32.gmra.mxu0 %v37
  %v56 = vpop.f32.mrf.mxu0
  %v57 = vadd.f32 0.0, %v56
  %58 = vdwg.mxu0
  %v59 = vld [vmem:[%s3] sm:$0xff]
  %v60 = vld [vmem:[%s3 + $0x8] sm:$0xff]
  %v61 = vld [vmem:[%s3 + $0x10] sm:$0xff]
  %v62 = vld [vmem:[%s3 + $0x18] sm:$0xff]
  %v63 = vld [vmem:[%s3 + $0x20] sm:$0xff]
  %v64 = vld [vmem:[%s3 + $0x28] sm:$0xff]
  %v65 = vld [vmem:[%s3 + $0x30] sm:$0xff]
  %v66 = vld [vmem:[%s3 + $0x38] sm:$0xff]
  %v68 = vsel %vm35, %v26, 0
  %70 = vmatpush.msra.mxu0 0.0
  %71 = vmatpush.msra.mxu0 0.0
  %72 = vmatpush.msra.mxu0 0.0
  %73 = vmatpush.msra.mxu0 0.0
  %74 = vmatpush.msra.mxu0 0.0
  %75 = vmatpush.msra.mxu0 0.0
  %76 = vmatpush.msra.mxu0 0.0
  %77 = vmatpush.msra.mxu0 0.0
  %78 = vmatpush.msra.mxu0 %v66
  %79 = vmatpush.msra.mxu0 %v65
  %80 = vmatpush.msra.mxu0 %v64
  %81 = vmatpush.msra.mxu0 %v63
  %82 = vmatpush.msra.mxu0 %v62
  %83 = vmatpush.msra.mxu0 %v61
  %84 = vmatpush.msra.mxu0 %v60
  %85 = vmatpush.msra.mxu0 %v59
  %86 = vmatmul.f32.gmra.mxu0 %v68
  %v87 = vpop.f32.mrf.mxu0
  %v88 = vadd.f32 0.0, %v87
  %89 = vdwg.mxu0
  %91 = vrot.lane.b32.xlu0 %v88, 64
  %v92 = vpop.permute.xlu0 %91
  %v94 = vsel %vm35, %v57, %v92
  %v95 = vld [vmem:[%s4] sm:$0x1]
  %v97 = vperm.slane %v95, 0
  %v99 = vmul.f32 %v94, %v97
  %v100 = vld [vmem:[%s5] sm:$0x1]
  %v102 = vperm.slane %v100, 0
  %v104 = vadd.f32 %v99, %v102
  %105 = vst [vmem:[%s6] sm:$0xff] %v104
  // Predicated region
  $region26: #{factorized_reduce.3} parent=0 // pred_check
    _
  $region27: #{factorized_reduce.3} parent=0 // pred_check_branch
    %107 = sbr.rel (0) target = $region29
  $region28: #{factorized_reduce.3} parent=0 // pred_region
    _
  $region29: #{factorized_reduce.3} parent=0 // pred_fallthru
    _
  // Predicated region
  $region30: #{factorized_reduce.3} parent=0 // pred_check
    _
  $region31: #{factorized_reduce.3} parent=0 // pred_check_branch
    %109 = sbr.rel (0) target = $region33
  $region32: #{factorized_reduce.3} parent=0 // pred_region
    _
  $region33: #{factorized_reduce.3} parent=0 // pred_fallthru
    _

</llo_original>
